<compile_context>
chip_gen: v7x
topology: tpu7x:2x2x1
jax: 0.10.0
libtpu: 0.0.40
codegen_flags: <defaults>
</compile_context>

<pallas_src>
import functools

import jax
import jax.numpy as jnp
from jax.experimental import pallas as pl
from jax.experimental.pallas import tpu as pltpu


def _round_up(x, m):
    return ((x + m - 1) // m) * m


def _cdiv(a, b):
    return (a + b - 1) // b


_BLOCK_VMEM_BYTES = 2 * 1024 * 1024   # target VMEM bytes per streamed input block
_MAX_TILE_ROWS = 4096                 # bounds lane-padding waste of (rows, 1) aux blocks


def _sublane_multiple(dtype):
    # f32 -> 8, bf16 -> 16, int8/fp8 -> 32
    return {4: 8, 2: 16, 1: 32}.get(jnp.dtype(dtype).itemsize, 8)


def _row_tile(n_rows, n_cols, dtype):
    """Rows per streamed block, from a VMEM byte budget with lane-padded width."""
    itemsize = jnp.dtype(dtype).itemsize
    sub = _sublane_multiple(dtype)
    lane_pad = _round_up(max(n_cols, 1), 128)      # VMEM pads the lane dim to 128
    rows = _BLOCK_VMEM_BYTES // (lane_pad * itemsize)
    rows = max(sub, (rows // sub) * sub)
    rows = min(rows, _MAX_TILE_ROWS)
    rows = min(rows, _round_up(max(n_rows, 1), sub))
    return rows


# ---------------------------------------------------------------------------
# Single fused kernel: streamed part loss + batch-level losses
# ---------------------------------------------------------------------------
def _fused_loss_kernel(*refs, part_mode, part_n, part_c, part_k, part_tile,
                       ignore_index, has_glob, has_decomp, has_seg):
    it = iter(refs)
    # ---- inputs (order must match the wrapper) ----
    if part_mode is not None:
        part_x_ref = next(it)
        part_lab_ref = next(it)
    if has_glob:
        gx_ref = next(it)
        gz_ref = next(it)
    if has_decomp or has_seg:
        gt_ref = next(it)
    if has_decomp:
        comp_ref = next(it)
    if has_seg:
        segl_ref = next(it)
    # ---- outputs ----
    if part_mode is not None:
        part_sum_ref = next(it)
    if has_glob:
        glob_sum_ref = next(it)
    if has_decomp:
        decomp_sum_ref = next(it)
    if has_seg:
        seg_sum_ref = next(it)
    # ---- scratch ----
    if part_mode is not None:
        acc_ref = next(it)

    i = pl.program_id(0)

    # ---------------- streamed point-level part loss ----------------
    if part_mode is not None:
        @pl.when(i == 0)
        def _init_acc():
            acc_ref[...] = jnp.zeros_like(acc_ref)

        x = part_x_ref[...].astype(jnp.float32)          # (tile, width)
        tn, width = x.shape

        if part_mode == "ce":
            lab = part_lab_ref[...]                       # (tile, 1) int32
            col = jax.lax.broadcasted_iota(jnp.int32, (tn, width), 1)
            m = jnp.max(x, axis=-1, keepdims=True)
            lse = m + jnp.log(jnp.sum(jnp.exp(x - m), axis=-1, keepdims=True))
            picked = jnp.sum(jnp.where(col == lab, x, 0.0), axis=-1, keepdims=True)
            per_row = lse - picked                        # (tile, 1)
            row = jax.lax.broadcasted_iota(jnp.int32, (tn, 1), 0) + i * part_tile
            valid = row < part_n
            if ignore_index is not None:
                valid = valid & (lab != ignore_index)
            acc_ref[...] += jnp.where(valid, per_row, 0.0)
        else:  # "bce": lane-packed layout, in-kernel one-hot, columns >= 1 only
            lab = part_lab_ref[...]                       # (tile, k) int32
            lane = jax.lax.broadcasted_iota(jnp.int32, (tn, width), 1)
            if part_k == 1:
                colmod = lane
                grp = jnp.zeros_like(lane)
            else:
                colmod = jnp.bitwise_and(lane, part_c - 1)           # lane % C
                grp = jnp.right_shift(lane, part_c.bit_length() - 1)  # lane // C
            z = jnp.zeros((tn, width), jnp.float32)
            for j in range(part_k):                        # k cheap broadcast/selects
                hit = (grp == j) & (colmod == lab[:, j:j + 1])
                z = jnp.where(hit, 1.0, z)
            # stable BCE-with-logits: max(x,0) - x*z + log1p(exp(-|x|))
            per = jnp.maximum(x, 0.0) - x * z + jnp.log1p(jnp.exp(-jnp.abs(x)))
            prow = jax.lax.broadcasted_iota(jnp.int32, (tn, width), 0) + i * part_tile
            orig_row = prow * part_k + grp
            valid = (orig_row < part_n) & (colmod >= 1)
            acc_ref[...] += jnp.sum(jnp.where(valid, per, 0.0),
                                    axis=-1, keepdims=True)

        @pl.when(i == pl.num_programs(0) - 1)
        def _finalize_part():
            part_sum_ref[...] = jnp.sum(acc_ref[...], keepdims=True)

    # -------- small batch-level losses: computed once from resident blocks --------
    if has_glob or has_decomp or has_seg:
        @pl.when(i == 0)
        def _batch_level():
            if has_glob:
                xg = gx_ref[...].astype(jnp.float32)       # (B, C)
                zg = gz_ref[...].astype(jnp.float32)
                bg, cg = xg.shape
                colg = jax.lax.broadcasted_iota(jnp.int32, (bg, cg), 1)
                perg = (jnp.maximum(xg, 0.0) - xg * zg
                        + jnp.log1p(jnp.exp(-jnp.abs(xg))))
                glob_sum_ref[...] = jnp.sum(jnp.where(colg >= 1, perg, 0.0),
                                            keepdims=True)
            if has_decomp or has_seg:
                gl = gt_ref[...]                           # (B, 1) int32

                def _ce_sum(logits_ref):
                    xs = logits_ref[...].astype(jnp.float32)
                    b, c = xs.shape
                    cols = jax.lax.broadcasted_iota(jnp.int32, (b, c), 1)
                    ms = jnp.max(xs, axis=-1, keepdims=True)
                    lses = ms + jnp.log(jnp.sum(jnp.exp(xs - ms), axis=-1,
                                                keepdims=True))
                    pick = jnp.sum(jnp.where(cols == gl, xs, 0.0), axis=-1,
                                   keepdims=True)
                    return jnp.sum(lses - pick, keepdims=True)

                if has_decomp:
                    decomp_sum_ref[...] = _ce_sum(comp_ref)
                if has_seg:
                    seg_sum_ref[...] = _ce_sum(segl_ref)


# ---------------------------------------------------------------------------
# Wrapper: builds the single fused pallas_call and finishes the means in JAX
# ---------------------------------------------------------------------------
def part_cls_loss_forward(preds, labels, *, part_cls=1.0, part_cls_bce=False,
                          global_part_cls=1.0, decomp=0.0, seg_cls=0.0,
                          num_classes=-1):
    part_mode = None
    if part_cls > 0.0:
        part_mode = "bce" if part_cls_bce else "ce"
    has_glob = global_part_cls > 0.0
    has_decomp = decomp > 0.0
    has_seg = seg_cls > 0.0

    inputs, in_specs = [], []
    out_shapes, out_specs = [], []
    scratch_shapes = []
    acc_spec = pl.BlockSpec((1, 1), lambda i: (0, 0))     # resident scalar output
    scalar_out = jax.ShapeDtypeStruct((1, 1), jnp.float32)

    n_tiles = 1
    part_n = part_c = part_k = part_tile = 0
    ignore_index = None

    if part_mode is not None:
        x = preds["part_pred"]
        lab = preds["part_label"].astype(jnp.int32)
        part_n, part_c = x.shape
        if part_mode == "ce":
            ignore_index = 0
            part_k = 1
            part_tile = _row_tile(part_n, part_c, x.dtype)
            n_tiles = _cdiv(part_n, part_tile)
            inputs += [x, lab.reshape(part_n, 1)]
            in_specs += [pl.BlockSpec((part_tile, part_c), lambda i: (i, 0)),
                         pl.BlockSpec((part_tile, 1), lambda i: (i, 0))]
        else:
            assert num_classes == part_c, (
                "part_cls_bce requires num_classes == part_pred.shape[1]")
            # lane-dense packing (N, C) -> (N/k, k*C) when C | 128
            part_k = 128 // part_c if (part_c < 128 and 128 % part_c == 0) else 1
            if part_k > 1:
                n_pad = _round_up(part_n, part_k)
                if n_pad != part_n:
                    x = jnp.pad(x, ((0, n_pad - part_n), (0, 0)))
                    lab = jnp.pad(lab, ((0, n_pad - part_n),))
                xp = x.reshape(n_pad // part_k, part_k * part_c)
                labp = lab.reshape(n_pad // part_k, part_k)
            else:
                xp = x
                labp = lab.reshape(part_n, 1)
            rows_p, width = xp.shape
            part_tile = _row_tile(rows_p, width, xp.dtype)
            n_tiles = _cdiv(rows_p, part_tile)
            inputs += [xp, labp]
            in_specs += [pl.BlockSpec((part_tile, width), lambda i: (i, 0)),
                         pl.BlockSpec((part_tile, part_k), lambda i: (i, 0))]
        out_shapes.append(scalar_out)
        out_specs.append(acc_spec)
        scratch_shapes.append(pltpu.VMEM((part_tile, 1), jnp.float32))

    if has_glob:
        gx = preds["global_part_pred"]
        gz = preds["global_part_label"]
        inputs += [gx, gz]
        in_specs += [pl.BlockSpec(gx.shape, lambda i: (0, 0)),
                     pl.BlockSpec(gz.shape, lambda i: (0, 0))]
        out_shapes.append(scalar_out)
        out_specs.append(acc_spec)

    if has_decomp or has_seg:
        gt = labels["gt_class_label"].astype(jnp.int32).reshape(-1, 1)
        inputs.append(gt)
        in_specs.append(pl.BlockSpec(gt.shape, lambda i: (0, 0)))
    if has_decomp:
        cs = preds["comp_score"]
        inputs.append(cs)
        in_specs.append(pl.BlockSpec(cs.shape, lambda i: (0, 0)))
        out_shapes.append(scalar_out)
        out_specs.append(acc_spec)
    if has_seg:
        sg = preds["seg_cls"]
        inputs.append(sg)
        in_specs.append(pl.BlockSpec(sg.shape, lambda i: (0, 0)))
        out_shapes.append(scalar_out)
        out_specs.append(acc_spec)

    if not out_shapes:
        return {}

    kernel = functools.partial(
        _fused_loss_kernel,
        part_mode=part_mode, part_n=part_n, part_c=part_c, part_k=part_k,
        part_tile=part_tile, ignore_index=ignore_index,
        has_glob=has_glob, has_decomp=has_decomp, has_seg=has_seg)

    outs = pl.pallas_call(
        kernel,
        out_shape=tuple(out_shapes),
        grid=(n_tiles,),
        in_specs=in_specs,
        out_specs=tuple(out_specs),
        scratch_shapes=tuple(scratch_shapes),
        compiler_params=pltpu.CompilerParams(
            dimension_semantics=("arbitrary",),
            vmem_limit_bytes=32 * 1024 * 1024),
    )(*inputs)
    if not isinstance(outs, (tuple, list)):
        outs = (outs,)

    # Means: all counts are static or tiny plain-JAX ops (no in-kernel counts).
    loss_dict = {}
    idx = 0
    if part_mode == "ce":
        total = outs[idx][0, 0]; idx += 1
        # PyTorch semantics: mean over non-ignored rows (NaN if all ignored).
        count = jnp.sum(preds["part_label"] != ignore_index).astype(jnp.float32)
        loss_dict["part_cls_loss"] = part_cls * total / count
    elif part_mode == "bce":
        total = outs[idx][0, 0]; idx += 1
        loss_dict["part_cls_loss_bce"] = part_cls * total / float(part_n * (part_c - 1))
    if has_glob:
        total = outs[idx][0, 0]; idx += 1
        bg, cg = preds["global_part_pred"].shape
        loss_dict["global_part_cls_loss"] = global_part_cls * total / float(bg * (cg - 1))
    if has_decomp:
        total = outs[idx][0, 0]; idx += 1
        loss_dict["decomp_loss"] = decomp * total / float(labels["gt_class_label"].shape[0])
    if has_seg:
        total = outs[idx][0, 0]; idx += 1
        loss_dict["seg_cls_loss"] = seg_cls * total / float(labels["gt_class_label"].shape[0])
    return loss_dict


# ---------------------------------------------------------------------------
# PartClsLoss (forward-pass equivalent)
# ---------------------------------------------------------------------------
class PartClsLossPallas:
    def __init__(self, part_cls=1.0, part_cls_bce=False, global_part_cls=1.0,
                 decomp=0.0, pose=0.0, num_classes=-1, seg_cls=0.0):
        self.part_cls = part_cls
        self.part_cls_bce = part_cls_bce
        self.global_part_cls = global_part_cls
        self.decomp = decomp
        self.pose = pose          # unused in forward (matches reference)
        self.num_classes = num_classes
        self.seg_cls = seg_cls

    def __call__(self, preds, labels):
        return part_cls_loss_forward(
            preds, labels,
            part_cls=self.part_cls, part_cls_bce=self.part_cls_bce,
            global_part_cls=self.global_part_cls, decomp=self.decomp,
            seg_cls=self.seg_cls, num_classes=self.num_classes)


# ---------------------------------------------------------------------------
# Pure-JAX references for sanity checking
# ---------------------------------------------------------------------------
def _ref_ce(logits, labels, ignore_index=None):
    logits = logits.astype(jnp.float32)
    lse = jax.scipy.special.logsumexp(logits, axis=-1)
    picked = jnp.take_along_axis(logits, labels[:, None].astype(jnp.int32), axis=-1)[:, 0]
    per = lse - picked
    if ignore_index is not None:
        valid = (labels != ignore_index).astype(jnp.float32)
    else:
        valid = jnp.ones_like(per)
    return jnp.sum(per * valid) / jnp.sum(valid)


def _ref_bce(x, z):
    x = x.astype(jnp.float32)
    z = z.astype(jnp.float32)
    per = jnp.maximum(x, 0.0) - x * z + jnp.log1p(jnp.exp(-jnp.abs(x)))
    return jnp.mean(per)


# ---------------------------------------------------------------------------
if __name__ == "__main__":
    key = jax.random.PRNGKey(0)
    k1, k3, k4, k5, k6, k7 = jax.random.split(key, 6)

    N_POINTS = 8
    NUM_PART_CLASSES = 16
    BATCH = 4                     # < 8 on purpose: exercises full-dim small blocks
    NUM_SHAPE_CLASSES = 8

    # deterministic part labels with both ignored (0) and valid classes
    part_label = jnp.array([0, 3, 7, 0, 12, 5, 1, 9], dtype=jnp.int32)

    preds = {
        'part_pred': jax.random.normal(k1, (N_POINTS, NUM_PART_CLASSES), jnp.float32),
        'part_label': part_label,
        'global_part_pred': jax.random.normal(k3, (BATCH, NUM_PART_CLASSES), jnp.float32),
        'global_part_label': jax.random.bernoulli(
            k4, 0.5, (BATCH, NUM_PART_CLASSES)).astype(jnp.float32),
        'comp_score': jax.random.normal(k5, (BATCH, NUM_SHAPE_CLASSES), jnp.float32),
        'seg_cls': jax.random.normal(k6, (BATCH, NUM_SHAPE_CLASSES), jnp.float32),
    }
    labels = {
        'gt_class_label': jax.random.randint(
            k7, (BATCH,), 0, NUM_SHAPE_CLASSES, dtype=jnp.int32),
    }

    # default config: part CE (ignore_index=0) + global BCE + decomp + seg_cls
    loss_fn = PartClsLossPallas(
        part_cls=1.0, part_cls_bce=False, global_part_cls=1.0,
        decomp=0.5, num_classes=NUM_PART_CLASSES, seg_cls=0.5)
    loss_dict = jax.block_until_ready(loss_fn(preds, labels))

    # also exercise the lane-packed BCE-on-part-labels branch
    loss_fn_bce = PartClsLossPallas(
        part_cls=1.0, part_cls_bce=True, global_part_cls=0.0,
        decomp=0.0, num_classes=NUM_PART_CLASSES, seg_cls=0.0)
    loss_dict_bce = jax.block_until_ready(loss_fn_bce(preds, labels))

    # sanity check vs pure-JAX references
    ref = {
        'part_cls_loss': 1.0 * _ref_ce(preds['part_pred'], preds['part_label'], 0),
        'global_part_cls_loss': 1.0 * _ref_bce(
            preds['global_part_pred'][:, 1:], preds['global_part_label'][:, 1:]),
        'decomp_loss': 0.5 * _ref_ce(preds['comp_score'], labels['gt_class_label']),
        'seg_cls_loss': 0.5 * _ref_ce(preds['seg_cls'], labels['gt_class_label']),
    }
    for k, v in ref.items():
        assert jnp.allclose(loss_dict[k], v, atol=1e-5), (k, loss_dict[k], v)

    ref_bce_part = 1.0 * _ref_bce(
        preds['part_pred'][:, 1:],
        jax.nn.one_hot(preds['part_label'], NUM_PART_CLASSES)[:, 1:])
    assert jnp.allclose(loss_dict_bce['part_cls_loss_bce'], ref_bce_part, atol=1e-5), (
        loss_dict_bce['part_cls_loss_bce'], ref_bce_part)

    print("KERNEL_OK")
</pallas_src>

<mosaic_0001>
module attributes {stable_mosaic.version = 11 : i64} {
  func.func @_fused_loss_kernel(%arg0: i32, %arg1: memref<8x16xf32, #tpu.memory_space<vmem>>, %arg2: memref<8x1xi32, #tpu.memory_space<vmem>>, %arg3: memref<4x16xf32, #tpu.memory_space<vmem>>, %arg4: memref<4x16xf32, #tpu.memory_space<vmem>>, %arg5: memref<4x1xi32, #tpu.memory_space<vmem>>, %arg6: memref<4x8xf32, #tpu.memory_space<vmem>>, %arg7: memref<4x8xf32, #tpu.memory_space<vmem>>, %arg8: memref<1x1xf32, #tpu.memory_space<vmem>>, %arg9: memref<1x1xf32, #tpu.memory_space<vmem>>, %arg10: memref<1x1xf32, #tpu.memory_space<vmem>>, %arg11: memref<1x1xf32, #tpu.memory_space<vmem>>, %arg12: memref<8x1xf32, #tpu.memory_space<vmem>>) attributes {dimension_semantics = [#tpu.dimension_semantics<arbitrary>], iteration_bounds = array<i64: 1>, scalar_prefetch = 0 : i64, scratch_operands = 1 : i64, tpu.core_type = #tpu.core_type<tc>, window_params = [{transform_indices = @transform_0, window_bounds = array<i64: 8, 16>}, {transform_indices = @transform_1, window_bounds = array<i64: 8, 1>}, {pipeline_mode = #tpu.pipeline_mode<synchronous>, transform_indices = @transform_2, window_bounds = array<i64: 4, 16>}, {pipeline_mode = #tpu.pipeline_mode<synchronous>, transform_indices = @transform_3, window_bounds = array<i64: 4, 16>}, {pipeline_mode = #tpu.pipeline_mode<synchronous>, transform_indices = @transform_4, window_bounds = array<i64: 4, 1>}, {pipeline_mode = #tpu.pipeline_mode<synchronous>, transform_indices = @transform_5, window_bounds = array<i64: 4, 8>}, {pipeline_mode = #tpu.pipeline_mode<synchronous>, transform_indices = @transform_6, window_bounds = array<i64: 4, 8>}, {pipeline_mode = #tpu.pipeline_mode<synchronous>, transform_indices = @transform_7, window_bounds = array<i64: 1, 1>}, {pipeline_mode = #tpu.pipeline_mode<synchronous>, transform_indices = @transform_8, window_bounds = array<i64: 1, 1>}, {pipeline_mode = #tpu.pipeline_mode<synchronous>, transform_indices = @transform_9, window_bounds = array<i64: 1, 1>}, {pipeline_mode = #tpu.pipeline_mode<synchronous>, transform_indices = @transform_10, window_bounds = array<i64: 1, 1>}]} {
    %c0_i32 = arith.constant 0 : i32
    %0 = arith.cmpi eq, %arg0, %c0_i32 : i32
    %1 = arith.extui %0 : i1 to i32
    %c0_i32_0 = arith.constant 0 : i32
    %2 = arith.cmpi ne, %1, %c0_i32_0 : i32
    scf.if %2 {
      %cst_18 = arith.constant 0.000000e+00 : f32
      %42 = vector.broadcast %cst_18 : f32 to vector<8x1xf32>
      %c0_19 = arith.constant 0 : index
      %c0_20 = arith.constant 0 : index
      %43 = vector.load %arg12[%c0_19, %c0_20] : memref<8x1xf32, #tpu.memory_space<vmem>>, vector<8x1xf32>
      tpu.vector_store %arg12[%c0_19, %c0_20], %42 {strides = array<i32>} : memref<8x1xf32, #tpu.memory_space<vmem>>, vector<8x1xf32>,
    } else {
    }
    %c0 = arith.constant 0 : index
    %c0_1 = arith.constant 0 : index
    %3 = vector.load %arg1[%c0, %c0_1] : memref<8x16xf32, #tpu.memory_space<vmem>>, vector<8x16xf32>
    %c0_2 = arith.constant 0 : index
    %c0_3 = arith.constant 0 : index
    %4 = vector.load %arg2[%c0_2, %c0_3] : memref<8x1xi32, #tpu.memory_space<vmem>>, vector<8x1xi32>
    %5 = tpu.iota {dimensions = array<i32: 1>} : vector<8x16xi32>
    %cst = arith.constant dense<0xFF800000> : vector<8xf32>
    %6 = vector.multi_reduction <maximumf>, %3, %cst [1] : vector<8x16xf32> to vector<8xf32>
    %7 = vector.shape_cast %6 : vector<8xf32> to vector<8x1xf32>
    %8 = vector.broadcast %7 : vector<8x1xf32> to vector<8x16xf32>
    %9 = arith.subf %3, %8 : vector<8x16xf32>
    %10 = math.exp %9 : vector<8x16xf32>
    %cst_4 = arith.constant dense<0.000000e+00> : vector<8xf32>
    %11 = vector.multi_reduction <add>, %10, %cst_4 [1] : vector<8x16xf32> to vector<8xf32>
    %12 = vector.shape_cast %11 : vector<8xf32> to vector<8x1xf32>
    %13 = math.log %12 : vector<8x1xf32>
    %14 = arith.addf %7, %13 : vector<8x1xf32>
    %15 = vector.broadcast %4 : vector<8x1xi32> to vector<8x16xi32>
    %16 = arith.cmpi eq, %5, %15 : vector<8x16xi32>
    %cst_5 = arith.constant 0.000000e+00 : f32
    %17 = vector.broadcast %cst_5 : f32 to vector<8x16xf32>
    %18 = arith.select %16, %3, %17 : vector<8x16xi1>, vector<8x16xf32>
    %cst_6 = arith.constant dense<0.000000e+00> : vector<8xf32>
    %19 = vector.multi_reduction <add>, %18, %cst_6 [1] : vector<8x16xf32> to vector<8xf32>
    %20 = vector.shape_cast %19 : vector<8xf32> to vector<8x1xf32>
    %21 = arith.subf %14, %20 : vector<8x1xf32>
    %22 = tpu.iota {dimensions = array<i32: 0>} : vector<8x1xi32>
    %c8_i32 = arith.constant 8 : i32
    %23 = arith.muli %arg0, %c8_i32 : i32
    %24 = vector.broadcast %23 : i32 to vector<8x1xi32>
    %25 = arith.addi %22, %24 : vector<8x1xi32>
    %c8_i32_7 = arith.constant 8 : i32
    %26 = vector.broadcast %c8_i32_7 : i32 to vector<8x1xi32>
    %27 = arith.cmpi slt, %25, %26 : vector<8x1xi32>
    %c0_i32_8 = arith.constant 0 : i32
    %28 = vector.broadcast %c0_i32_8 : i32 to vector<8x1xi32>
    %29 = arith.cmpi ne, %4, %28 : vector<8x1xi32>
    %30 = arith.andi %27, %29 : vector<8x1xi1>
    %c0_9 = arith.constant 0 : index
    %c0_10 = arith.constant 0 : index
    %31 = vector.load %arg12[%c0_9, %c0_10] : memref<8x1xf32, #tpu.memory_space<vmem>>, vector<8x1xf32>
    %cst_11 = arith.constant 0.000000e+00 : f32
    %32 = vector.broadcast %cst_11 : f32 to vector<8x1xf32>
    %33 = arith.select %30, %21, %32 : vector<8x1xi1>, vector<8x1xf32>
    %34 = arith.addf %31, %33 : vector<8x1xf32>
    %c0_12 = arith.constant 0 : index
    %c0_13 = arith.constant 0 : index
    %35 = vector.load %arg12[%c0_12, %c0_13] : memref<8x1xf32, #tpu.memory_space<vmem>>, vector<8x1xf32>
    tpu.vector_store %arg12[%c0_12, %c0_13], %34 {strides = array<i32>} : memref<8x1xf32, #tpu.memory_space<vmem>>, vector<8x1xf32>,
    %c0_i32_14 = arith.constant 0 : i32
    %36 = arith.cmpi eq, %arg0, %c0_i32_14 : i32
    %37 = arith.extui %36 : i1 to i32
    %c0_i32_15 = arith.constant 0 : i32
    %38 = arith.cmpi ne, %37, %c0_i32_15 : i32
    scf.if %38 {
      %c0_18 = arith.constant 0 : index
      %c0_19 = arith.constant 0 : index
      %42 = vector.load %arg12[%c0_18, %c0_19] : memref<8x1xf32, #tpu.memory_space<vmem>>, vector<8x1xf32>
      %43 = vector.shape_cast %42 : vector<8x1xf32> to vector<1x8x1xf32>
      %cst_20 = arith.constant dense<0.000000e+00> : vector<1xf32>
      %44 = vector.multi_reduction <add>, %43, %cst_20 [1, 2] : vector<1x8x1xf32> to vector<1xf32>
      %45 = vector.shape_cast %44 : vector<1xf32> to vector<1x1x1xf32>
      %46 = vector.extract %45[0, 0, 0] : f32 from vector<1x1x1xf32>
      %47 = vector.broadcast %46 : f32 to vector<1x1xf32>
      %c0_21 = arith.constant 0 : index
      %c0_22 = arith.constant 0 : index
      %48 = vector.load %arg8[%c0_21, %c0_22] : memref<1x1xf32, #tpu.memory_space<vmem>>, vector<1x1xf32>
      tpu.vector_store %arg8[%c0_21, %c0_22], %47 {strides = array<i32>} : memref<1x1xf32, #tpu.memory_space<vmem>>, vector<1x1xf32>,
    } else {
    }
    %c0_i32_16 = arith.constant 0 : i32
    %39 = arith.cmpi eq, %arg0, %c0_i32_16 : i32
    %40 = arith.extui %39 : i1 to i32
    %c0_i32_17 = arith.constant 0 : i32
    %41 = arith.cmpi ne, %40, %c0_i32_17 : i32
    scf.if %41 {
      %c0_18 = arith.constant 0 : index
      %c0_19 = arith.constant 0 : index
      %42 = vector.load %arg3[%c0_18, %c0_19] : memref<4x16xf32, #tpu.memory_space<vmem>>, vector<4x16xf32>
      %c0_20 = arith.constant 0 : index
      %c0_21 = arith.constant 0 : index
      %43 = vector.load %arg4[%c0_20, %c0_21] : memref<4x16xf32, #tpu.memory_space<vmem>>, vector<4x16xf32>
      %44 = tpu.iota {dimensions = array<i32: 1>} : vector<4x16xi32>
      %cst_22 = arith.constant 0.000000e+00 : f32
      %45 = vector.broadcast %cst_22 : f32 to vector<4x16xf32>
      %46 = arith.maximumf %42, %45 : vector<4x16xf32>
      %47 = arith.mulf %42, %43 : vector<4x16xf32>
      %48 = arith.subf %46, %47 : vector<4x16xf32>
      %49 = math.absf %42 : vector<4x16xf32>
      %cst_23 = arith.constant 0.000000e+00 : f32
      %50 = vector.broadcast %cst_23 : f32 to vector<4x16xf32>
      %51 = arith.subf %50, %49 : vector<4x16xf32>
      %52 = math.exp %51 : vector<4x16xf32>
      %53 = math.log1p %52 : vector<4x16xf32>
      %54 = arith.addf %48, %53 : vector<4x16xf32>
      %c1_i32 = arith.constant 1 : i32
      %55 = vector.broadcast %c1_i32 : i32 to vector<4x16xi32>
      %56 = arith.cmpi sge, %44, %55 : vector<4x16xi32>
      %cst_24 = arith.constant 0.000000e+00 : f32
      %57 = vector.broadcast %cst_24 : f32 to vector<4x16xf32>
      %58 = arith.select %56, %54, %57 : vector<4x16xi1>, vector<4x16xf32>
      %59 = vector.shape_cast %58 : vector<4x16xf32> to vector<1x4x16xf32>
      %cst_25 = arith.constant dense<0.000000e+00> : vector<1xf32>
      %60 = vector.multi_reduction <add>, %59, %cst_25 [1, 2] : vector<1x4x16xf32> to vector<1xf32>
      %61 = vector.shape_cast %60 : vector<1xf32> to vector<1x1x1xf32>
      %62 = vector.extract %61[0, 0, 0] : f32 from vector<1x1x1xf32>
      %63 = vector.broadcast %62 : f32 to vector<1x1xf32>
      %c0_26 = arith.constant 0 : index
      %c0_27 = arith.constant 0 : index
      %64 = vector.load %arg9[%c0_26, %c0_27] : memref<1x1xf32, #tpu.memory_space<vmem>>, vector<1x1xf32>
      tpu.vector_store %arg9[%c0_26, %c0_27], %63 {strides = array<i32>} : memref<1x1xf32, #tpu.memory_space<vmem>>, vector<1x1xf32>,
      %c0_28 = arith.constant 0 : index
      %c0_29 = arith.constant 0 : index
      %65 = vector.load %arg5[%c0_28, %c0_29] : memref<4x1xi32, #tpu.memory_space<vmem>>, vector<4x1xi32>
      %c0_30 = arith.constant 0 : index
      %c0_31 = arith.constant 0 : index
      %66 = vector.load %arg6[%c0_30, %c0_31] : memref<4x8xf32, #tpu.memory_space<vmem>>, vector<4x8xf32>
      %67 = tpu.iota {dimensions = array<i32: 1>} : vector<4x8xi32>
      %cst_32 = arith.constant dense<0xFF800000> : vector<4xf32>
      %68 = vector.multi_reduction <maximumf>, %66, %cst_32 [1] : vector<4x8xf32> to vector<4xf32>
      %69 = vector.shape_cast %68 : vector<4xf32> to vector<4x1xf32>
      %70 = vector.broadcast %69 : vector<4x1xf32> to vector<4x8xf32>
      %71 = arith.subf %66, %70 : vector<4x8xf32>
      %72 = math.exp %71 : vector<4x8xf32>
      %cst_33 = arith.constant dense<0.000000e+00> : vector<4xf32>
      %73 = vector.multi_reduction <add>, %72, %cst_33 [1] : vector<4x8xf32> to vector<4xf32>
      %74 = vector.shape_cast %73 : vector<4xf32> to vector<4x1xf32>
      %75 = math.log %74 : vector<4x1xf32>
      %76 = arith.addf %69, %75 : vector<4x1xf32>
      %77 = vector.broadcast %65 : vector<4x1xi32> to vector<4x8xi32>
      %78 = arith.cmpi eq, %67, %77 : vector<4x8xi32>
      %cst_34 = arith.constant 0.000000e+00 : f32
      %79 = vector.broadcast %cst_34 : f32 to vector<4x8xf32>
      %80 = arith.select %78, %66, %79 : vector<4x8xi1>, vector<4x8xf32>
      %cst_35 = arith.constant dense<0.000000e+00> : vector<4xf32>
      %81 = vector.multi_reduction <add>, %80, %cst_35 [1] : vector<4x8xf32> to vector<4xf32>
      %82 = vector.shape_cast %81 : vector<4xf32> to vector<4x1xf32>
      %83 = arith.subf %76, %82 : vector<4x1xf32>
      %84 = vector.shape_cast %83 : vector<4x1xf32> to vector<1x4x1xf32>
      %cst_36 = arith.constant dense<0.000000e+00> : vector<1xf32>
      %85 = vector.multi_reduction <add>, %84, %cst_36 [1, 2] : vector<1x4x1xf32> to vector<1xf32>
      %86 = vector.shape_cast %85 : vector<1xf32> to vector<1x1x1xf32>
      %87 = vector.extract %86[0, 0, 0] : f32 from vector<1x1x1xf32>
      %88 = vector.broadcast %87 : f32 to vector<1x1xf32>
      %c0_37 = arith.constant 0 : index
      %c0_38 = arith.constant 0 : index
      %89 = vector.load %arg10[%c0_37, %c0_38] : memref<1x1xf32, #tpu.memory_space<vmem>>, vector<1x1xf32>
      tpu.vector_store %arg10[%c0_37, %c0_38], %88 {strides = array<i32>} : memref<1x1xf32, #tpu.memory_space<vmem>>, vector<1x1xf32>,
      %c0_39 = arith.constant 0 : index
      %c0_40 = arith.constant 0 : index
      %90 = vector.load %arg7[%c0_39, %c0_40] : memref<4x8xf32, #tpu.memory_space<vmem>>, vector<4x8xf32>
      %91 = tpu.iota {dimensions = array<i32: 1>} : vector<4x8xi32>
      %cst_41 = arith.constant dense<0xFF800000> : vector<4xf32>
      %92 = vector.multi_reduction <maximumf>, %90, %cst_41 [1] : vector<4x8xf32> to vector<4xf32>
      %93 = vector.shape_cast %92 : vector<4xf32> to vector<4x1xf32>
      %94 = vector.broadcast %93 : vector<4x1xf32> to vector<4x8xf32>
      %95 = arith.subf %90, %94 : vector<4x8xf32>
      %96 = math.exp %95 : vector<4x8xf32>
      %cst_42 = arith.constant dense<0.000000e+00> : vector<4xf32>
      %97 = vector.multi_reduction <add>, %96, %cst_42 [1] : vector<4x8xf32> to vector<4xf32>
      %98 = vector.shape_cast %97 : vector<4xf32> to vector<4x1xf32>
      %99 = math.log %98 : vector<4x1xf32>
      %100 = arith.addf %93, %99 : vector<4x1xf32>
      %101 = vector.broadcast %65 : vector<4x1xi32> to vector<4x8xi32>
      %102 = arith.cmpi eq, %91, %101 : vector<4x8xi32>
      %cst_43 = arith.constant 0.000000e+00 : f32
      %103 = vector.broadcast %cst_43 : f32 to vector<4x8xf32>
      %104 = arith.select %102, %90, %103 : vector<4x8xi1>, vector<4x8xf32>
      %cst_44 = arith.constant dense<0.000000e+00> : vector<4xf32>
      %105 = vector.multi_reduction <add>, %104, %cst_44 [1] : vector<4x8xf32> to vector<4xf32>
      %106 = vector.shape_cast %105 : vector<4xf32> to vector<4x1xf32>
      %107 = arith.subf %100, %106 : vector<4x1xf32>
      %108 = vector.shape_cast %107 : vector<4x1xf32> to vector<1x4x1xf32>
      %cst_45 = arith.constant dense<0.000000e+00> : vector<1xf32>
      %109 = vector.multi_reduction <add>, %108, %cst_45 [1, 2] : vector<1x4x1xf32> to vector<1xf32>
      %110 = vector.shape_cast %109 : vector<1xf32> to vector<1x1x1xf32>
      %111 = vector.extract %110[0, 0, 0] : f32 from vector<1x1x1xf32>
      %112 = vector.broadcast %111 : f32 to vector<1x1xf32>
      %c0_46 = arith.constant 0 : index
      %c0_47 = arith.constant 0 : index
      %113 = vector.load %arg11[%c0_46, %c0_47] : memref<1x1xf32, #tpu.memory_space<vmem>>, vector<1x1xf32>
      tpu.vector_store %arg11[%c0_46, %c0_47], %112 {strides = array<i32>} : memref<1x1xf32, #tpu.memory_space<vmem>>, vector<1x1xf32>,
    } else {
    }
    return
  }
  func.func @transform_0(%arg0: i32) -> (i32, i32) {
    %c0_i32 = arith.constant 0 : i32
    %c0_i32_0 = arith.constant 0 : i32
    return %arg0, %c0_i32 : i32, i32
  }
  func.func @transform_1(%arg0: i32) -> (i32, i32) {
    %c0_i32 = arith.constant 0 : i32
    %c0_i32_0 = arith.constant 0 : i32
    return %arg0, %c0_i32 : i32, i32
  }
  func.func @transform_2(%arg0: i32) -> (i32, i32) {
    %c0_i32 = arith.constant 0 : i32
    %c0_i32_0 = arith.constant 0 : i32
    %c0_i32_1 = arith.constant 0 : i32
    return %c0_i32, %c0_i32_0 : i32, i32
  }
  func.func @transform_3(%arg0: i32) -> (i32, i32) {
    %c0_i32 = arith.constant 0 : i32
    %c0_i32_0 = arith.constant 0 : i32
    %c0_i32_1 = arith.constant 0 : i32
    return %c0_i32, %c0_i32_0 : i32, i32
  }
  func.func @transform_4(%arg0: i32) -> (i32, i32) {
    %c0_i32 = arith.constant 0 : i32
    %c0_i32_0 = arith.constant 0 : i32
    %c0_i32_1 = arith.constant 0 : i32
    return %c0_i32, %c0_i32_0 : i32, i32
  }
  func.func @transform_5(%arg0: i32) -> (i32, i32) {
    %c0_i32 = arith.constant 0 : i32
    %c0_i32_0 = arith.constant 0 : i32
    %c0_i32_1 = arith.constant 0 : i32
    return %c0_i32, %c0_i32_0 : i32, i32
  }
  func.func @transform_6(%arg0: i32) -> (i32, i32) {
    %c0_i32 = arith.constant 0 : i32
    %c0_i32_0 = arith.constant 0 : i32
    %c0_i32_1 = arith.constant 0 : i32
    return %c0_i32, %c0_i32_0 : i32, i32
  }
  func.func @transform_7(%arg0: i32) -> (i32, i32) {
    %c0_i32 = arith.constant 0 : i32
    %c0_i32_0 = arith.constant 0 : i32
    %c0_i32_1 = arith.constant 0 : i32
    return %c0_i32, %c0_i32_0 : i32, i32
  }
  func.func @transform_8(%arg0: i32) -> (i32, i32) {
    %c0_i32 = arith.constant 0 : i32
    %c0_i32_0 = arith.constant 0 : i32
    %c0_i32_1 = arith.constant 0 : i32
    return %c0_i32, %c0_i32_0 : i32, i32
  }
  func.func @transform_9(%arg0: i32) -> (i32, i32) {
    %c0_i32 = arith.constant 0 : i32
    %c0_i32_0 = arith.constant 0 : i32
    %c0_i32_1 = arith.constant 0 : i32
    return %c0_i32, %c0_i32_0 : i32, i32
  }
  func.func @transform_10(%arg0: i32) -> (i32, i32) {
    %c0_i32 = arith.constant 0 : i32
    %c0_i32_0 = arith.constant 0 : i32
    %c0_i32_1 = arith.constant 0 : i32
    return %c0_i32, %c0_i32_0 : i32, i32
  }
}

</mosaic_0001>

<llo_original>
// kernel: tpu_custom_call.1
$region0: #{tpu_custom_call.1}
  #allocation0 [shape = 'u32[]', space=smem, size = 0x4, offset = 0x4, fixed_abs, tag = 'smem constant byte address 0x4 - core index']
  #allocation1 [shape = 'u32[144,128]{1,0:T(1,128)}', space=vmem, size = 0x12000, scoped, tag = 'internal scratch']
  #allocation2 [shape = 'f32[8,1]{1,0:T(8,128)}', space=vmem, size = 0x1000, scoped, tag = 'scratch operand']
  %s0 = inlined_call_operand.vmem [shape: f32[8,16], index: 0, kind: input, shape index: {}]
  %s1 = inlined_call_operand.vmem [shape: s32[8,1], index: 1, kind: input, shape index: {}]
  %s2 = inlined_call_operand.vmem [shape: f32[4,16], index: 2, kind: input, shape index: {}]
  %s3 = inlined_call_operand.vmem [shape: f32[4,16], index: 3, kind: input, shape index: {}]
  %s4 = inlined_call_operand.vmem [shape: s32[4,1], index: 4, kind: input, shape index: {}]
  %s5 = inlined_call_operand.vmem [shape: f32[4,8], index: 5, kind: input, shape index: {}]
  %s6 = inlined_call_operand.vmem [shape: f32[4,8], index: 6, kind: input, shape index: {}]
  %s7 = inlined_call_operand.hbm [shape: f32[1,1], index: 7, kind: output, shape index: {0}]
  %s8 = inlined_call_operand.hbm [shape: f32[1,1], index: 8, kind: output, shape index: {1}]
  %s9 = inlined_call_operand.hbm [shape: f32[1,1], index: 9, kind: output, shape index: {2}]
  %s10 = inlined_call_operand.hbm [shape: f32[1,1], index: 10, kind: output, shape index: {3}]
  %11 = xla_tuple %s7, %s8, %s9, %s10
  %s12 = sld [smem:[#allocation0]]
  $region70: #{tpu_custom_call.1} parent=0
    _
  %s14 = ssub.s32 1, %s12
  %s15 = scalar_select 0, %s14, %s12
  $region1: #{tpu_custom_call.1} parent=0
    #allocation3 [shape = 'u8[512]{0}', space=vmem, size = 0x400, scoped, tag = 'output window, operand 0, single buffered']
    #allocation4 [shape = 's32[1]{0}', space=sflag, size = 0x4, scoped, tag = 'scoped memory for tpu_custom_call.1']
    #allocation5 [shape = 'u8[512]{0}', space=vmem, size = 0x400, scoped, tag = 'output window, operand 1, single buffered']
    #allocation6 [shape = 's32[1]{0}', space=sflag, size = 0x4, scoped, tag = 'scoped memory for tpu_custom_call.1']
    #allocation7 [shape = 'u8[512]{0}', space=vmem, size = 0x400, scoped, tag = 'output window, operand 2, single buffered']
    #allocation8 [shape = 'u8[512]{0}', space=vmem, size = 0x400, scoped, tag = 'output window, operand 3, single buffered']
    #allocation9 [shape = 's32[1]{0}', space=sflag, size = 0x4, scoped, tag = 'scoped memory for tpu_custom_call.1']
    %16 = vsyncpa [#allocation4], 0
    %17 = vsyncpa [#allocation6], 0
    %18 = vsyncpa [#allocation9], 0
    // Predicated region
    $region2: #{tpu_custom_call.1} parent=1 // pred_check
      _
    $region3: #{tpu_custom_call.1} parent=1 // pred_check_branch
      %20 = sbr.rel (0) target = $region5
    $region4: #{tpu_custom_call.1} parent=1 // pred_region
      _
    $region5: #{tpu_custom_call.1} parent=1 // pred_fallthru
      _
    // Predicated region
    $region6: #{tpu_custom_call.1} parent=1 // pred_check
      _
    $region7: #{tpu_custom_call.1} parent=1 // pred_check_branch
      %22 = sbr.rel (0) target = $region9
    $region8: #{tpu_custom_call.1} parent=1 // pred_region
      _
    $region9: #{tpu_custom_call.1} parent=1 // pred_fallthru
      _
    // Predicated region
    $region10: #{tpu_custom_call.1} parent=1 // pred_check
      _
    $region11: #{tpu_custom_call.1} parent=1 // pred_check_branch
      %24 = sbr.rel (0) target = $region13
    $region12: #{tpu_custom_call.1} parent=1 // pred_region
      _
    $region13: #{tpu_custom_call.1} parent=1 // pred_fallthru
      _
    // Predicated region
    $region14: #{tpu_custom_call.1} parent=1 // pred_check
      _
    $region15: #{tpu_custom_call.1} parent=1 // pred_check_branch
      %26 = sbr.rel (0) target = $region17
    $region16: #{tpu_custom_call.1} parent=1 // pred_region
      _
    $region17: #{tpu_custom_call.1} parent=1 // pred_fallthru
      _
    // Predicated region
    $region18: #{tpu_custom_call.1} parent=1 // pred_check
      _
    $region19: #{tpu_custom_call.1} parent=1 // pred_check_branch
      %28 = sbr.rel (0) target = $region21
    $region20: #{tpu_custom_call.1} parent=1 // pred_region
      _
    $region21: #{tpu_custom_call.1} parent=1 // pred_fallthru
      _
    // Predicated region
    $region22: #{tpu_custom_call.1} parent=1 // pred_check
      _
    $region23: #{tpu_custom_call.1} parent=1 // pred_check_branch
      %30 = sbr.rel (0) target = $region25
    $region24: #{tpu_custom_call.1} parent=1 // pred_region
      _
    $region25: #{tpu_custom_call.1} parent=1 // pred_fallthru
      _
    // Predicated region
    $region26: #{tpu_custom_call.1} parent=1 // pred_check
      _
    $region27: #{tpu_custom_call.1} parent=1 // pred_check_branch
      %32 = sbr.rel (0) target = $region29
    $region28: #{tpu_custom_call.1} parent=1 // pred_region
      _
    $region29: #{tpu_custom_call.1} parent=1 // pred_fallthru
      _
    %p33 = scmp.eq.s32.totalorder 0, 0
    // Predicated region
    $region30: #{tpu_custom_call.1} parent=1 // pred_check
      %p34 = pneg %p33
    $region31: #{tpu_custom_call.1} parent=1 // pred_check_branch
      %36 = sbr.rel (%p34) target = $region33
    $region32: #{tpu_custom_call.1} parent=1 // pred_region
      %vm37 = vcmask 7168
      %38 = vst.msk [vmem:[#allocation2] sm:$0xff] %vm37, 0.0
    $region33: #{tpu_custom_call.1} parent=1 // pred_fallthru
      _
    %v39 = vld [vmem:[%s0] sm:$0xff]
    %v40 = vld [vmem:[%s1] sm:$0xff]
    %v41 = vlaneseq
    %v42 = vand.u32 %v41, 127
    %vm43 = vcmask 130048
    %v44 = vsel %vm43, %v39, -inf
    %45 = vmax.xlane.f32.xlu0 %v44
    %v46 = vpop.xlane.xlu0 %45
    %v47 = vsub.f32 %v39, %v46
    %v48 = vmul.f32 %v47, 1.442695
    %v49 = vpow.pop %v48
    %v50 = vsel %vm43, %v49, 0.0
    %51 = vadd.xlane.f32.xlu0 %v50
    %v52 = vpop.xlane.xlu0 %51
    %v53 = vlog2.pop %v52
    %v54 = vmul.f32 %v53, 0.6931472
    %v55 = vadd.f32 %v46, %v54
    %56 = vset.pattern.permute.xlu0 0
    %57 = vperm.xlu0 %56, %v40
    %v58 = vpop.permute.xlu0 %57
    %vm59 = vcmp.eq.s32.totalorder %v42, %v58
    %v60 = vsel %vm59, %v39, 0.0
    %v61 = vsel %vm43, %v60, 0.0
    %62 = vadd.xlane.f32.xlu0 %v61
    %v63 = vpop.xlane.xlu0 %62
    %v64 = vsub.f32 %v55, %v63
    %v65 = vlaneseq
    %v66 = vshrl.u32 %v65, 7
    %s67 = smul.u32 0, 8
    %v68 = vstv %s67
    %v69 = vadd.s32 %v66, %v68
    %vm70 = vcmp.lt.s32.totalorder %v69, 8
    %vm71 = vcmp.ne.s32.totalorder %v40, 0
    %vm72 = vmand %vm70, %vm71
    %v73 = vld [vmem:[#allocation2] sm:$0xff]
    %v74 = vsel %vm72, %v64, 0.0
    %v75 = vadd.f32 %v73, %v74
    %vm76 = vcmask 7168
    %77 = vst.msk [vmem:[#allocation2] sm:$0xff] %vm76, %v75
    // Predicated region
    $region34: #{tpu_custom_call.1} parent=1 // pred_check
      %p78 = pneg %p33
    $region35: #{tpu_custom_call.1} parent=1 // pred_check_branch
      %80 = sbr.rel (%p78) target = $region37
    $region36: #{tpu_custom_call.1} parent=1 // pred_region
      %v81 = vld [vmem:[#allocation2] sm:$0xff]
      %v82 = vsel %vm76, %v81, 0.0
      %83 = vadd.xlane.f32.xlu0 %v82
      %v84 = vpop.xlane.xlu0 %83
      %v85 = vrot.slane %v84, 4
      %v86 = vadd.f32 %v84, %v85
      %v87 = vrot.slane %v86, 2
      %v88 = vadd.f32 %v86, %v87
      %v89 = vrot.slane %v88, 1
      %v90 = vadd.f32 %v88, %v89
      %s91 = vtos %v90
      %v92 = vstv %s91
      %vm93 = vcmask 0
      %94 = vst.msk [vmem:[#allocation3] sm:$0x1] %vm93, %v92
      %v95 = vld [vmem:[%s2] sm:$0xf]
      %v96 = vld [vmem:[%s3] sm:$0xf]
      %v97 = vmax.f32 %v95, 0.0
      %v98 = vmul.f32 %v95, %v96
      %v99 = vsub.f32 %v97, %v98
      %v100 = vand.u32 2147483647, %v95
      %v101 = vsub.f32 0.0, %v100
      %v102 = vmul.f32 %v101, 1.442695
      %v103 = vpow.pop %v102
      %v104 = vadd.f32 %v103, 1.0
      %v105 = vlog2.pop %v104
      %v106 = vmul.f32 %v105, 0.6931472
      %v107 = vmul.f32 -0.5, %v103
      %v108 = vadd.f32 %v107, 1.0
      %v109 = vmul.f32 %v108, %v103
      %v110 = vand.u32 2147483647, %v103
      %vm111 = vcmp.lt.f32.partialorder %v110, 0.0004427343
      %v112 = vsel %vm111, %v109, %v106
      %v113 = vadd.f32 %v99, %v112
      %vm114 = vcmp.ge.s32.totalorder %v42, 1
      %v115 = vsel %vm114, %v113, 0.0
      %vm116 = vcmask 125952
      %v117 = vsel %vm116, %v115, 0.0
      %118 = vadd.xlane.f32.xlu0 %v117
      %v119 = vpop.xlane.xlu0 %118
      %v120 = vrot.slane %v119, 4
      %v121 = vadd.f32 %v119, %v120
      %v122 = vrot.slane %v121, 2
      %v123 = vadd.f32 %v121, %v122
      %v124 = vrot.slane %v123, 1
      %v125 = vadd.f32 %v123, %v124
      %s126 = vtos %v125
      %v127 = vstv %s126
      %128 = vst.msk [vmem:[#allocation5] sm:$0x1] %vm93, %v127
      %v129 = vld [vmem:[%s4] sm:$0xf]
      %v130 = vld [vmem:[%s5] sm:$0xf]
      %vm131 = vcmask 60416
      %v132 = vsel %vm131, %v130, -inf
      %133 = vmax.xlane.f32.xlu0 %v132
      %v134 = vpop.xlane.xlu0 %133
      %v135 = vsub.f32 %v130, %v134
      %v136 = vmul.f32 %v135, 1.442695
      %v137 = vpow.pop %v136
      %v138 = vsel %vm131, %v137, 0.0
      %139 = vadd.xlane.f32.xlu0 %v138
      %v140 = vpop.xlane.xlu0 %139
      %v141 = vlog2.pop %v140
      %v142 = vmul.f32 %v141, 0.6931472
      %v143 = vadd.f32 %v134, %v142
      %144 = vset.pattern.permute.xlu0 0
      %145 = vperm.xlu0 %144, %v129
      %v146 = vpop.permute.xlu0 %145
      %vm147 = vcmp.eq.s32.totalorder %v42, %v146
      %v148 = vsel %vm147, %v130, 0.0
      %v149 = vsel %vm131, %v148, 0.0
      %150 = vadd.xlane.f32.xlu0 %v149
      %v151 = vpop.xlane.xlu0 %150
      %v152 = vsub.f32 %v143, %v151
      %vm153 = vcmask 3072
      %v154 = vsel %vm153, %v152, 0.0
      %155 = vadd.xlane.f32.xlu0 %v154
      %v156 = vpop.xlane.xlu0 %155
      %v157 = vrot.slane %v156, 4
      %v158 = vadd.f32 %v156, %v157
      %v159 = vrot.slane %v158, 2
      %v160 = vadd.f32 %v158, %v159
      %v161 = vrot.slane %v160, 1
      %v162 = vadd.f32 %v160, %v161
      %s163 = vtos %v162
      %v164 = vstv %s163
      %165 = vst.msk [vmem:[#allocation7] sm:$0x1] %vm93, %v164
      %v166 = vld [vmem:[%s6] sm:$0xf]
      %v167 = vsel %vm131, %v166, -inf
      %168 = vmax.xlane.f32.xlu0 %v167
      %v169 = vpop.xlane.xlu0 %168
      %v170 = vsub.f32 %v166, %v169
      %v171 = vmul.f32 %v170, 1.442695
      %v172 = vpow.pop %v171
      %v173 = vsel %vm131, %v172, 0.0
      %174 = vadd.xlane.f32.xlu0 %v173
      %v175 = vpop.xlane.xlu0 %174
      %v176 = vlog2.pop %v175
      %v177 = vmul.f32 %v176, 0.6931472
      %v178 = vadd.f32 %v169, %v177
      %v179 = vsel %vm147, %v166, 0.0
      %v180 = vsel %vm131, %v179, 0.0
      %181 = vadd.xlane.f32.xlu0 %v180
      %v182 = vpop.xlane.xlu0 %181
      %v183 = vsub.f32 %v178, %v182
      %v184 = vsel %vm153, %v183, 0.0
      %185 = vadd.xlane.f32.xlu0 %v184
      %v186 = vpop.xlane.xlu0 %185
      %v187 = vrot.slane %v186, 4
      %v188 = vadd.f32 %v186, %v187
      %v189 = vrot.slane %v188, 2
      %v190 = vadd.f32 %v188, %v189
      %v191 = vrot.slane %v190, 1
      %v192 = vadd.f32 %v190, %v191
      %s193 = vtos %v192
      %v194 = vstv %s193
      %195 = vst.msk [vmem:[#allocation8] sm:$0x1] %vm93, %v194
    $region37: #{tpu_custom_call.1} parent=1 // pred_fallthru
      _
    // Predicated region
    $region38: #{tpu_custom_call.1} parent=1 // pred_check
      _
    $region39: #{tpu_custom_call.1} parent=1 // pred_check_branch
      %197 = sbr.rel (0) target = $region41
    $region40: #{tpu_custom_call.1} parent=1 // pred_region
      %s199 = ssub.s32 16, 16
      %200 = vsyncadd [#allocation4], %s199
      %s202 = sshll.u32 [#allocation3], 4
      %s203 = int_to_ptr.vmem [resolvable:$true] %s202
      %205 = dma.vmem_to_hbm [thread:$0]  %s203, 16, %s7, [#allocation4]
    $region41: #{tpu_custom_call.1} parent=1 // pred_fallthru
      _
    // Predicated region
    $region42: #{tpu_custom_call.1} parent=1 // pred_check
      _
    $region43: #{tpu_custom_call.1} parent=1 // pred_check_branch
      %207 = sbr.rel (0) target = $region45
    $region44: #{tpu_custom_call.1} parent=1 // pred_region
      %s209 = ssub.s32 16, 16
      %210 = vsyncadd [#allocation6], %s209
      %s212 = sshll.u32 [#allocation5], 4
      %s213 = int_to_ptr.vmem [resolvable:$true] %s212
      %215 = dma.vmem_to_hbm [thread:$0]  %s213, 16, %s8, [#allocation6]
    $region45: #{tpu_custom_call.1} parent=1 // pred_fallthru
      _
    // Predicated region
    $region46: #{tpu_custom_call.1} parent=1 // pred_check
      _
    $region47: #{tpu_custom_call.1} parent=1 // pred_check_branch
      %217 = sbr.rel (0) target = $region49
    $region48: #{tpu_custom_call.1} parent=1 // pred_region
      %s219 = ssub.s32 16, 16
      %220 = vsyncadd [#allocation6], %s219
      %s222 = sshll.u32 [#allocation7], 4
      %s223 = int_to_ptr.vmem [resolvable:$true] %s222
      %225 = dma.vmem_to_hbm [thread:$0]  %s223, 16, %s9, [#allocation6]
    $region49: #{tpu_custom_call.1} parent=1 // pred_fallthru
      _
    // Predicated region
    $region50: #{tpu_custom_call.1} parent=1 // pred_check
      _
    $region51: #{tpu_custom_call.1} parent=1 // pred_check_branch
      %227 = sbr.rel (0) target = $region53
    $region52: #{tpu_custom_call.1} parent=1 // pred_region
      %s229 = ssub.s32 16, 16
      %230 = vsyncadd [#allocation9], %s229
      %s232 = sshll.u32 [#allocation8], 4
      %s233 = int_to_ptr.vmem [resolvable:$true] %s232
      %235 = dma.vmem_to_hbm [thread:$0]  %s233, 16, %s10, [#allocation9]
    $region53: #{tpu_custom_call.1} parent=1 // pred_fallthru
      _
    // Predicated region
    $region54: #{tpu_custom_call.1} parent=1 // pred_check
      _
    $region55: #{tpu_custom_call.1} parent=1 // pred_check_branch
      %237 = sbr.rel (0) target = $region57
    $region56: #{tpu_custom_call.1} parent=1 // pred_region
      %238 = dma.done [#allocation4], 16
    $region57: #{tpu_custom_call.1} parent=1 // pred_fallthru
      _
    // Predicated region
    $region58: #{tpu_custom_call.1} parent=1 // pred_check
      _
    $region59: #{tpu_custom_call.1} parent=1 // pred_check_branch
      %240 = sbr.rel (0) target = $region61
    $region60: #{tpu_custom_call.1} parent=1 // pred_region
      %241 = dma.done [#allocation6], 16
    $region61: #{tpu_custom_call.1} parent=1 // pred_fallthru
      _
    // Predicated region
    $region62: #{tpu_custom_call.1} parent=1 // pred_check
      _
    $region63: #{tpu_custom_call.1} parent=1 // pred_check_branch
      %243 = sbr.rel (0) target = $region65
    $region64: #{tpu_custom_call.1} parent=1 // pred_region
      %244 = dma.done [#allocation6], 16
    $region65: #{tpu_custom_call.1} parent=1 // pred_fallthru
      _
    // Predicated region
    $region66: #{tpu_custom_call.1} parent=1 // pred_check
      _
    $region67: #{tpu_custom_call.1} parent=1 // pred_check_branch
      %246 = sbr.rel (0) target = $region69
    $region68: #{tpu_custom_call.1} parent=1 // pred_region
      %247 = dma.done [#allocation9], 16
    $region69: #{tpu_custom_call.1} parent=1 // pred_fallthru
      _
    %248 = vsyncpa [#allocation4], 1
    %249 = vsyncpa [#allocation6], 1
    %250 = vsyncpa [#allocation9], 1

</llo_original>
